<compile_context>
chip_gen: v7x
topology: tpu7x:2x2x1
jax: 0.10.0
libtpu: 0.0.40
codegen_flags: <defaults>
</compile_context>

<pallas_src>
import functools
import math

import jax
import jax.numpy as jnp
import numpy as np
from jax import lax
from jax.experimental import pallas as pl
from jax.experimental.pallas import tpu as pltpu

N_BITS = 8
N_LEVELS = 2 ** N_BITS
KH = KW = 3
KTAPS = KH * KW


def _fake_quant(x, delta, zero_point, inv_delta):
    # UniformAffineQuantizer.forward (value path; round_ste == round at inference):
    #   x_int   = round(x * (1/delta)) + zero_point
    #   x_quant = clip(x_int, 0, n_levels - 1)
    #   x_deq   = (x_quant - zero_point) * delta
    x_int = jnp.round(x * inv_delta) + zero_point
    x_quant = jnp.clip(x_int, 0.0, float(N_LEVELS - 1))
    return (x_quant - zero_point) * delta


# -------- Kernel 1: one-time weight fake-quant (per-output-channel params), cached --------
def _weight_quant_kernel(w_ref, d_ref, zp_ref, invd_ref, o_ref):
    # w_ref: (OC, KTAPS*C) GEMM-layout weight; d/zp/invd: (OC, 1) per-output-channel.
    o_ref[...] = _fake_quant(
        w_ref[...], d_ref[...], zp_ref[...], invd_ref[...]).astype(o_ref.dtype)


def weight_fake_quant(w_mat, delta_col, zp_col, inv_delta_col, out_dtype):
    return pl.pallas_call(
        _weight_quant_kernel,
        out_shape=jax.ShapeDtypeStruct(w_mat.shape, out_dtype),
        in_specs=[pl.BlockSpec(memory_space=pltpu.MemorySpace.VMEM)] * 4,
        out_specs=pl.BlockSpec(memory_space=pltpu.MemorySpace.VMEM),
    )(w_mat, delta_col, zp_col, inv_delta_col)


# -------- Kernel 2: fused act fake-quant + 3x3 conv as a single K=KH*KW*Cpad GEMM ---------
def _conv3x3_quant_kernel(x_ref, w_ref, b_ref, o_ref, *,
                          H, W, CP, B, a_delta, a_zp, a_inv_delta, mxu_dtype):
    # x_ref: (B, CP, LP)  zero-padded + row-flattened NCHW images (raw, un-quantized f32)
    # w_ref: (OC, KTAPS*CP) fake-quantized weight, tap-major, resident across grid steps
    # b_ref: (OC, 1)       bias
    # o_ref: (B, OC, H*(W+2)) conv output on the width-padded pixel grid (lane-dense)
    Wp = W + 2
    HWp = H * Wp

    wq = w_ref[...]                                             # (OC, K) resident operand
    bias = b_ref[...]                                           # (OC, 1) f32

    # Fused activation fake-quant (f32 VPU math; pad zeros stay exactly zero because
    # 0 <= act zero_point <= n_levels-1, matching F.conv2d's pad-after-quant semantics).
    xq = _fake_quant(x_ref[...], a_delta, a_zp, a_inv_delta)    # (B, CP, LP) f32
    xq = xq.astype(mxu_dtype)

    for b in range(B):                                          # small static batch tile
        g = xq[b]                                               # (CP, LP)
        # Shift trick: for output column q = h*(W+2)+w,
        #   out[oc, q] = sum_{kh,kw,c} Wq[oc,c,kh,kw] * g[c, q + kh*(W+2) + kw]
        # so every tap is a static lane-shifted slice of the SAME flattened image.
        taps = [g[:, kh * Wp + kw: kh * Wp + kw + HWp]
                for kh in range(KH) for kw in range(KW)]        # 9 x (CP, HWp)
        patches = jnp.concatenate(taps, axis=0)                 # (KTAPS*CP, HWp), aligned
        acc = jnp.dot(wq, patches, preferred_element_type=jnp.float32)   # (OC, HWp) f32
        o_ref[b] = acc + bias


class QuantModulePallas:
    """QuantModule(Conv2d 3x3/s1/p1, bias=True) with use_weight_quant=True, use_act_quant=True."""

    def __init__(self, key, in_ch, out_ch, ksize=3, mxu_dtype=jnp.float32):
        assert ksize == 3, "this port covers the 3x3 / stride 1 / padding 1 configuration"
        self.in_ch, self.out_ch, self.pad = in_ch, out_ch, ksize // 2
        self.cp = ((in_ch + 7) // 8) * 8          # sublane-aligned channel count
        self.mxu_dtype = mxu_dtype                # bf16 recommended on v6e/v7x at prod shapes

        kw_, kb_, kd_, kz_ = jax.random.split(key, 4)
        fan_in = in_ch * ksize * ksize
        bound = 1.0 / math.sqrt(fan_in)
        # synthetic "org_module" (nn.Conv2d) parameters
        self.weight = jax.random.uniform(kw_, (out_ch, in_ch, ksize, ksize),
                                         jnp.float32, -bound, bound)
        self.bias = jax.random.uniform(kb_, (out_ch,), jnp.float32, -bound, bound)
        # weight_quantizer params: torch.randn((OC,1,1,1)) delta / zero_point -> stored as (OC,)
        self.w_delta = jax.random.normal(kd_, (out_ch,), jnp.float32)
        self.w_zp = jax.random.normal(kz_, (out_ch,), jnp.float32)
        self.w_inv_delta = 1.0 / self.w_delta     # shared reciprocal: kernel & reference agree
        # act_quantizer params (need_init=False branch): scalar 0.005, baked as f32-exact
        # Python floats so the conv kernel needs no SMEM operand at all.
        self.a_delta = float(np.float32(0.005))
        self.a_zp = float(np.float32(0.005))
        self.a_inv_delta = float(np.float32(1.0) / np.float32(0.005))
        # zero padding stays exactly zero after fake-quant only under this condition
        assert 0.0 <= self.a_zp <= float(N_LEVELS - 1)

        # Weight fake-quant runs ONCE here (weights are static at inference) and is cached
        # in the GEMM-ready tap-major (OC, KTAPS*CP) layout -> no per-forward prep kernel.
        self._wq_mat = self._prep_quant_weight()
        self._bias_col = self.bias.reshape(out_ch, 1)

    # ------------------------------------------------------------------ weight prep (once)
    def _prep_quant_weight(self):
        OC, C, CP = self.out_ch, self.in_ch, self.cp
        # OIHW -> tap-major (OC, KH*KW*C): column = kh*KW*C + kw*C + c
        w_mat = jnp.transpose(self.weight, (0, 2, 3, 1)).reshape(OC, KTAPS * C)
        d = self.w_delta.reshape(OC, 1)
        z = self.w_zp.reshape(OC, 1)
        invd = self.w_inv_delta.reshape(OC, 1)
        wq = weight_fake_quant(w_mat, d, z, invd, self.mxu_dtype)     # (OC, KTAPS*C)
        # pad channels C -> CP with true zeros (fake channels contribute exactly 0)
        wq = jnp.pad(wq.reshape(OC, KTAPS, C), ((0, 0), (0, 0), (0, CP - C)))
        return wq.reshape(OC, KTAPS * CP)

    # ------------------------------------------------------------------ tiling helpers
    @staticmethod
    def _pick_batch_tile(n, hwp, lane_target=512):
        # enough output lanes per grid step to amortize the ~0.35us fixed step cost
        bt = max(1, min(n, -(-lane_target // hwp)))
        while n % bt:
            bt -= 1
        return bt

    # ------------------------------------------------------------------ forward
    def __call__(self, x_nchw):
        N, C, H, W = x_nchw.shape
        assert C == self.in_ch
        OC, CP = self.out_ch, self.cp
        Wp = W + 2
        HWp = H * Wp
        flat = (H + 2) * (W + 2)
        # flattened length must cover the largest tap shift (+2) ; round to 128 lanes
        LP = -(-(flat + 2) // 128) * 128

        # Single fused pad/flatten glue pass (no NHWC transpose, no OC padding anywhere):
        # channel pad C->CP, spatial zero pad (1,1), flatten spatial, lane-pad to LP.
        xp = jnp.pad(x_nchw, ((0, 0), (0, CP - C), (1, 1), (1, 1)))
        xflat = jnp.pad(xp.reshape(N, CP, flat), ((0, 0), (0, 0), (0, LP - flat)))

        B = self._pick_batch_tile(N, HWp)
        grid = (N // B,)
        kern = functools.partial(
            _conv3x3_quant_kernel, H=H, W=W, CP=CP, B=B,
            a_delta=self.a_delta, a_zp=self.a_zp, a_inv_delta=self.a_inv_delta,
            mxu_dtype=self.mxu_dtype)

        out_pad = pl.pallas_call(
            kern,
            out_shape=jax.ShapeDtypeStruct((N, OC, HWp), jnp.float32),
            grid_spec=pltpu.PrefetchScalarGridSpec(
                num_scalar_prefetch=0,
                grid=grid,
                in_specs=[
                    pl.BlockSpec((B, CP, LP), lambda n: (n, 0, 0)),          # images
                    pl.BlockSpec((OC, KTAPS * CP), lambda n: (0, 0)),        # resident weight
                    pl.BlockSpec((OC, 1), lambda n: (0, 0)),                 # resident bias
                ],
                out_specs=pl.BlockSpec((B, OC, HWp), lambda n: (n, 0, 0)),
            ),
            # batch axis is independent per step -> megacore sharding where grid > 1.
            # TODO(synk): for v7x with a single-step grid (tiny N), add an explicit
            # core-split axis over pixel-row tiles so both TensorCores are used.
            compiler_params=pltpu.CompilerParams(dimension_semantics=("parallel",)),
        )(xflat, self._wq_mat, self._bias_col)

        # Drop the 2 scratch columns per pixel row (width-padded grid -> W); the reshape is
        # metadata-only.  StraightThrough == identity, se_module is None.
        return out_pad.reshape(N, OC, H, Wp)[:, :, :, :W]

    # ------------------------------------------------------------------ pure-JAX reference
    def reference(self, x_nchw):
        # Mirror of F.conv2d(act_quant(x), weight_quant(W), bias, padding=1).  Uses the same
        # precomputed reciprocals as the kernels so the quantization grids are bit-identical.
        wq = _fake_quant(self.weight,
                         self.w_delta.reshape(-1, 1, 1, 1),
                         self.w_zp.reshape(-1, 1, 1, 1),
                         self.w_inv_delta.reshape(-1, 1, 1, 1))
        xq = _fake_quant(x_nchw, self.a_delta, self.a_zp, self.a_inv_delta)
        out = lax.conv_general_dilated(
            xq, wq, window_strides=(1, 1),
            padding=((self.pad, self.pad), (self.pad, self.pad)),
            dimension_numbers=("NCHW", "OIHW", "NCHW"),
            precision=lax.Precision.HIGHEST)
        return out + self.bias.reshape(1, -1, 1, 1)


if __name__ == "__main__":
    key = jax.random.PRNGKey(0)
    k_x, k_mod = jax.random.split(key)

    N, C, H, W, OC = 2, 4, 16, 16, 8
    x = jax.random.normal(k_x, (N, C, H, W), jnp.float32)   # PyTorch NCHW convention

    module = QuantModulePallas(k_mod, in_ch=C, out_ch=OC, ksize=3)

    forward = jax.jit(module.__call__)
    out = jax.block_until_ready(forward(x))
    ref = jax.block_until_ready(module.reference(x))
    np.testing.assert_allclose(np.asarray(out), np.asarray(ref), rtol=2e-3, atol=5e-2)

    # TODO(synk): init_quantization_scale ('max'/'mse' calibration used when need_init=True)
    # is one-time host-side calibration, not part of the steady-state forward; not ported.
    print("KERNEL_OK")
</pallas_src>

<mosaic_0001>
module attributes {stable_mosaic.version = 11 : i64} {
  func.func @_weight_quant_kernel(%arg0: memref<8x36xf32, #tpu.memory_space<vmem>>, %arg1: memref<8x1xf32, #tpu.memory_space<vmem>>, %arg2: memref<8x1xf32, #tpu.memory_space<vmem>>, %arg3: memref<8x1xf32, #tpu.memory_space<vmem>>, %arg4: memref<8x36xf32, #tpu.memory_space<vmem>>) attributes {dimension_semantics = [], scalar_prefetch = 0 : i64, scratch_operands = 0 : i64, tpu.core_type = #tpu.core_type<tc>} {
    %c0 = arith.constant 0 : index
    %c0_0 = arith.constant 0 : index
    %0 = vector.load %arg0[%c0, %c0_0] : memref<8x36xf32, #tpu.memory_space<vmem>>, vector<8x36xf32>
    %c0_1 = arith.constant 0 : index
    %c0_2 = arith.constant 0 : index
    %1 = vector.load %arg1[%c0_1, %c0_2] : memref<8x1xf32, #tpu.memory_space<vmem>>, vector<8x1xf32>
    %c0_3 = arith.constant 0 : index
    %c0_4 = arith.constant 0 : index
    %2 = vector.load %arg2[%c0_3, %c0_4] : memref<8x1xf32, #tpu.memory_space<vmem>>, vector<8x1xf32>
    %c0_5 = arith.constant 0 : index
    %c0_6 = arith.constant 0 : index
    %3 = vector.load %arg3[%c0_5, %c0_6] : memref<8x1xf32, #tpu.memory_space<vmem>>, vector<8x1xf32>
    %4 = vector.broadcast %3 : vector<8x1xf32> to vector<8x36xf32>
    %5 = arith.mulf %0, %4 : vector<8x36xf32>
    %6 = math.roundeven %5 : vector<8x36xf32>
    %7 = vector.broadcast %2 : vector<8x1xf32> to vector<8x36xf32>
    %8 = arith.addf %6, %7 : vector<8x36xf32>
    %cst = arith.constant 0.000000e+00 : f32
    %cst_7 = arith.constant 2.550000e+02 : f32
    %9 = vector.broadcast %cst : f32 to vector<8x36xf32>
    %10 = arith.maximumf %9, %8 : vector<8x36xf32>
    %11 = vector.broadcast %cst_7 : f32 to vector<8x36xf32>
    %12 = arith.minimumf %11, %10 : vector<8x36xf32>
    %13 = vector.broadcast %2 : vector<8x1xf32> to vector<8x36xf32>
    %14 = arith.subf %12, %13 : vector<8x36xf32>
    %15 = vector.broadcast %1 : vector<8x1xf32> to vector<8x36xf32>
    %16 = arith.mulf %14, %15 : vector<8x36xf32>
    %c0_8 = arith.constant 0 : index
    %c0_9 = arith.constant 0 : index
    %17 = vector.load %arg4[%c0_8, %c0_9] : memref<8x36xf32, #tpu.memory_space<vmem>>, vector<8x36xf32>
    tpu.vector_store %arg4[%c0_8, %c0_9], %16 {strides = array<i32>} : memref<8x36xf32, #tpu.memory_space<vmem>>, vector<8x36xf32>,
    return
  }
}

</mosaic_0001>

<llo_original>
// kernel: tpu_custom_call.1
$region0: #{tpu_custom_call.1}
  #allocation0 [shape = 'u32[]', space=smem, size = 0x4, offset = 0x4, fixed_abs, tag = 'smem constant byte address 0x4 - core index']
  #allocation1 [shape = 'u32[144,128]{1,0:T(1,128)}', space=vmem, size = 0x12000, scoped, tag = 'internal scratch']
  %s0 = inlined_call_operand.vmem [shape: f32[8,36], index: 0, kind: input, shape index: {}]
  %s1 = inlined_call_operand.vmem [shape: f32[8,1], index: 1, kind: input, shape index: {}]
  %s2 = inlined_call_operand.vmem [shape: f32[8,1], index: 2, kind: input, shape index: {}]
  %s3 = inlined_call_operand.vmem [shape: f32[8,1], index: 3, kind: input, shape index: {}]
  %s4 = inlined_call_operand.hbm [shape: f32[8,36], index: 4, kind: output, shape index: {}]
  %s5 = sld [smem:[#allocation0]]
  $region26: #{tpu_custom_call.1} parent=0
    _
  %s7 = ssub.s32 1, %s5
  %s8 = scalar_select 0, %s7, %s5
  $region1: #{tpu_custom_call.1} parent=0
    #allocation2 [shape = 'u8[4096]{0}', space=vmem, size = 0x1000, scoped, tag = 'output window, operand 0, single buffered']
    #allocation3 [shape = 's32[1]{0}', space=sflag, size = 0x4, scoped, tag = 'scoped memory for tpu_custom_call.1']
    %9 = vsyncpa [#allocation3], 0
    // Predicated region
    $region2: #{tpu_custom_call.1} parent=1 // pred_check
      _
    $region3: #{tpu_custom_call.1} parent=1 // pred_check_branch
      %11 = sbr.rel (0) target = $region5
    $region4: #{tpu_custom_call.1} parent=1 // pred_region
      _
    $region5: #{tpu_custom_call.1} parent=1 // pred_fallthru
      _
    // Predicated region
    $region6: #{tpu_custom_call.1} parent=1 // pred_check
      _
    $region7: #{tpu_custom_call.1} parent=1 // pred_check_branch
      %13 = sbr.rel (0) target = $region9
    $region8: #{tpu_custom_call.1} parent=1 // pred_region
      _
    $region9: #{tpu_custom_call.1} parent=1 // pred_fallthru
      _
    // Predicated region
    $region10: #{tpu_custom_call.1} parent=1 // pred_check
      _
    $region11: #{tpu_custom_call.1} parent=1 // pred_check_branch
      %15 = sbr.rel (0) target = $region13
    $region12: #{tpu_custom_call.1} parent=1 // pred_region
      _
    $region13: #{tpu_custom_call.1} parent=1 // pred_fallthru
      _
    // Predicated region
    $region14: #{tpu_custom_call.1} parent=1 // pred_check
      _
    $region15: #{tpu_custom_call.1} parent=1 // pred_check_branch
      %17 = sbr.rel (0) target = $region17
    $region16: #{tpu_custom_call.1} parent=1 // pred_region
      _
    $region17: #{tpu_custom_call.1} parent=1 // pred_fallthru
      _
    %v18 = vld [vmem:[%s0] sm:$0xff]
    %v19 = vld [vmem:[%s1] sm:$0xff]
    %v20 = vld [vmem:[%s2] sm:$0xff]
    %v21 = vld [vmem:[%s3] sm:$0xff]
    %23 = vset.pattern.permute.xlu0 0
    %24 = vperm.xlu0 %23, %v21
    %v25 = vpop.permute.xlu0 %24
    %v27 = vmul.f32 %v18, %v25
    %v28 = vround.ne.pseudo %v27
    %30 = vset.pattern.permute.xlu0 0
    %31 = vperm.xlu0 %30, %v20
    %v32 = vpop.permute.xlu0 %31
    %v34 = vadd.f32 %v28, %v32
    %v35 = vmax.f32 %v34, 0.0
    %v36 = vmin.f32 %v35, 255.0
    %v37 = vsub.f32 %v36, %v32
    %39 = vset.pattern.permute.xlu0 0
    %40 = vperm.xlu0 %39, %v19
    %v41 = vpop.permute.xlu0 %40
    %v43 = vmul.f32 %v37, %v41
    %vm44 = vcmask 293888
    %45 = vst.msk [vmem:[#allocation2] sm:$0xff] %vm44, %v43
    // Predicated region
    $region18: #{tpu_custom_call.1} parent=1 // pred_check
      _
    $region19: #{tpu_custom_call.1} parent=1 // pred_check_branch
      %47 = sbr.rel (0) target = $region21
    $region20: #{tpu_custom_call.1} parent=1 // pred_region
      %s49 = ssub.s32 128, 128
      %50 = vsyncadd [#allocation3], %s49
      %s52 = sshll.u32 [#allocation2], 4
      %s53 = int_to_ptr.vmem [resolvable:$true] %s52
      %55 = dma.vmem_to_hbm [thread:$0]  %s53, 128, %s4, [#allocation3]
    $region21: #{tpu_custom_call.1} parent=1 // pred_fallthru
      _
    // Predicated region
    $region22: #{tpu_custom_call.1} parent=1 // pred_check
      _
    $region23: #{tpu_custom_call.1} parent=1 // pred_check_branch
      %57 = sbr.rel (0) target = $region25
    $region24: #{tpu_custom_call.1} parent=1 // pred_region
      %58 = dma.done [#allocation3], 128
    $region25: #{tpu_custom_call.1} parent=1 // pred_fallthru
      _
    %59 = vsyncpa [#allocation3], 1

</llo_original>
